<compile_context>
chip_gen: v7x
topology: tpu7x:2x2x1
jax: 0.10.0
libtpu: 0.0.40
codegen_flags: <defaults>
</compile_context>

<pallas_src>
import functools

import jax
import jax.numpy as jnp
import numpy as np
from jax import lax
from jax.experimental import pallas as pl
from jax.experimental.pallas import tpu as pltpu


def _convblock_kernel(B, H, W, Cin, Cout,
                      x_ref, t1_ref, t2_ref, b_ref, o_ref):
    # x_ref : (1, B*H, W*Cin)        B images stacked along the row (M) axis
    # t1_ref: (3, W*Cin,  W*Cout)    banded Toeplitz weights, layer 1 (per kh)
    # t2_ref: (3, W*Cout, W*Cout)    banded Toeplitz weights, layer 2 (per kh)
    # b_ref : (2, W*Cout)            folded BN biases (scale is inside t1/t2)
    # o_ref : (1, B*H, W*Cout)       lane-dense output slab
    BH = B * H

    def conv3x3(x, t_ref, cols):
        # x: (BH, cols) f32.  Vertical taps via XLU roll + per-image row masks
        # (no padded scratch, no sublane-offset slices, no zero-fills).
        row = lax.broadcasted_iota(jnp.int32, (BH, cols), 0)
        not_first = row != 0              # first row of each image -> zero "up" tap
        not_last = row != BH - 1          # last row of each image -> zero "down" tap
        for i in range(1, B):
            not_first &= row != i * H
            not_last &= row != i * H - 1
        x_up = jnp.where(not_first, pltpu.roll(x, 1, axis=0), 0.0)
        x_dn = jnp.where(not_last, pltpu.roll(x, BH - 1, axis=0), 0.0)
        # Width padding + BN scale are folded into the Toeplitz slabs, so the
        # LHS is the unpadded lane-aligned slab and K = cols.
        acc = jnp.dot(x_up.astype(jnp.bfloat16), t_ref[0],
                      preferred_element_type=jnp.float32)
        acc = acc + jnp.dot(x.astype(jnp.bfloat16), t_ref[1],
                            preferred_element_type=jnp.float32)
        acc = acc + jnp.dot(x_dn.astype(jnp.bfloat16), t_ref[2],
                            preferred_element_type=jnp.float32)
        return acc

    x = x_ref[0]                                             # (BH, W*Cin) f32
    y1 = jnp.maximum(conv3x3(x, t1_ref, W * Cin) + b_ref[0:1, :], 0.0)
    y2 = jnp.maximum(conv3x3(y1, t2_ref, W * Cout) + b_ref[1:2, :], 0.0)
    o_ref[0] = y2.astype(o_ref.dtype)


def _toeplitz_weights(w_hwio, W, scale):
    """(3, 3, C, Co) HWIO conv weight -> (3, W*C, W*Co) banded bf16 slabs.

    T[kh, wi*C + c, wo*Co + co] = w[kh, wi-wo+1, c, co] * scale[co] when
    0 <= wi-wo+1 < 3, else 0.  Width (SAME, pad=1) padding and the BatchNorm
    per-channel scale are folded in, so the matmul LHS is the unpadded slab.
    """
    KH, KW, C, Co = w_hwio.shape
    wi = jnp.arange(W)[:, None]                 # input column
    wo = jnp.arange(W)[None, :]                 # output column
    kw = wi - wo + 1                            # kernel tap index (pad = 1)
    valid = (kw >= 0) & (kw < KW)
    kwc = jnp.clip(kw, 0, KW - 1)
    g = w_hwio[:, kwc, :, :]                    # (KH, W, W, C, Co)
    g = jnp.where(valid[None, :, :, None, None], g, 0.0)
    g = g * scale[None, None, None, None, :]    # fold BN scale into out-channels
    t = jnp.transpose(g, (0, 1, 3, 2, 4)).reshape(KH, W * C, W * Co)
    return t.astype(jnp.bfloat16)


def _pick_blocking(N, H, target_rows=128):
    """Choose images-per-step B (fill MXU M ~ 128) and grid length G = N // B.

    On v7x (2 TensorCores) an even grid >= 2 keeps both cores busy, so when
    filling M would collapse the grid to a single step we back off to G = 2.
    """
    b = 1
    for cand in range(1, N + 1):
        if N % cand == 0 and cand * H <= target_rows:
            b = cand
    g = N // b
    if g == 1 and N % 2 == 0 and N >= 2:
        b, g = N // 2, 2
    return b, g


def conv_block(x_nchw, params):
    """Full ConvBlock forward. Input/output in NCHW to match PyTorch."""
    N, Cin, H, W = x_nchw.shape
    Cout = params["w1"].shape[-1]
    B, G = _pick_blocking(N, H)

    # Layout glue in plain JAX (contiguous reshapes / transposes only).
    x = jnp.transpose(x_nchw, (0, 2, 3, 1)).astype(jnp.float32)   # NHWC
    x = x.reshape(G, B * H, W * Cin)

    t1 = _toeplitz_weights(params["w1"], W, params["scale1"])     # (3, W*Cin,  W*Cout)
    t2 = _toeplitz_weights(params["w2"], W, params["scale2"])     # (3, W*Cout, W*Cout)
    bias = jnp.stack([jnp.tile(params["bias1"], W),
                      jnp.tile(params["bias2"], W)]).astype(jnp.float32)  # (2, W*Cout)

    out = pl.pallas_call(
        functools.partial(_convblock_kernel, B, H, W, Cin, Cout),
        out_shape=jax.ShapeDtypeStruct((G, B * H, W * Cout), jnp.float32),
        grid_spec=pltpu.PrefetchScalarGridSpec(
            num_scalar_prefetch=0,
            grid=(G,),
            in_specs=[
                pl.BlockSpec((1, B * H, W * Cin), lambda g: (g, 0, 0)),
                pl.BlockSpec((3, W * Cin, W * Cout), lambda g: (0, 0, 0)),
                pl.BlockSpec((3, W * Cout, W * Cout), lambda g: (0, 0, 0)),
                pl.BlockSpec((2, W * Cout), lambda g: (0, 0)),
            ],
            out_specs=pl.BlockSpec((1, B * H, W * Cout), lambda g: (g, 0, 0)),
        ),
        compiler_params=pltpu.CompilerParams(
            dimension_semantics=("parallel",)),
    )(x, t1, t2, bias)

    out = out.reshape(N, H, W, Cout)
    return jnp.transpose(out, (0, 3, 1, 2))                       # NHWC -> NCHW


def make_params(key, in_dim, out_dim):
    """Deterministic synthetic parameters (shapes match nn.Conv2d/BatchNorm2d)."""
    k1, k2, k3, k4 = jax.random.split(key, 4)
    eps = 1e-5
    # Conv weights, PyTorch layout (Cout, Cin, 3, 3) -> HWIO.
    w1_oihw = jax.random.normal(k1, (out_dim, in_dim, 3, 3), jnp.float32) * 0.1
    w2_oihw = jax.random.normal(k2, (out_dim, out_dim, 3, 3), jnp.float32) * 0.1
    w1 = jnp.transpose(w1_oihw, (2, 3, 1, 0))
    w2 = jnp.transpose(w2_oihw, (2, 3, 1, 0))
    # BatchNorm params (inference mode, folded).
    gamma1 = 1.0 + 0.1 * jax.random.normal(k3, (out_dim,), jnp.float32)
    beta1 = jnp.zeros((out_dim,), jnp.float32)
    rmean1 = jnp.zeros((out_dim,), jnp.float32)
    rvar1 = jnp.ones((out_dim,), jnp.float32)
    gamma2 = 1.0 + 0.1 * jax.random.normal(k4, (out_dim,), jnp.float32)
    beta2 = jnp.zeros((out_dim,), jnp.float32)
    rmean2 = jnp.zeros((out_dim,), jnp.float32)
    rvar2 = jnp.ones((out_dim,), jnp.float32)

    scale1 = gamma1 / jnp.sqrt(rvar1 + eps)
    bias1 = beta1 - rmean1 * scale1
    scale2 = gamma2 / jnp.sqrt(rvar2 + eps)
    bias2 = beta2 - rmean2 * scale2
    return {"w1": w1, "scale1": scale1, "bias1": bias1,
            "w2": w2, "scale2": scale2, "bias2": bias2}


def _reference(x_nchw, params):
    """Pure-JAX reference (lax conv, f32) for correctness checking."""
    def step(x, w, s, b):
        y = lax.conv_general_dilated(
            x, w, window_strides=(1, 1), padding="SAME",
            dimension_numbers=("NHWC", "HWIO", "NHWC"))
        y = y * s[None, None, None, :] + b[None, None, None, :]
        return jnp.maximum(y, 0.0)

    x = jnp.transpose(x_nchw, (0, 2, 3, 1))
    x = step(x, params["w1"], params["scale1"], params["bias1"])
    x = step(x, params["w2"], params["scale2"], params["bias2"])
    return jnp.transpose(x, (0, 3, 1, 2))


if __name__ == "__main__":
    key = jax.random.PRNGKey(0)
    kx, kp = jax.random.split(key)

    N, C_in, C_out, H, W = 2, 4, 8, 16, 16
    x = jax.random.normal(kx, (N, C_in, H, W), jnp.float32)
    params = make_params(kp, C_in, C_out)

    out = conv_block(x, params)
    out = jax.block_until_ready(out)

    ref = jax.block_until_ready(_reference(x, params))
    # Looser tolerance: MXU operands are bf16 (reference is pure f32).
    np.testing.assert_allclose(np.asarray(out), np.asarray(ref),
                               rtol=5e-2, atol=5e-2)

    print("KERNEL_OK")
</pallas_src>

<mosaic_0001>
module attributes {stable_mosaic.version = 11 : i64} {
  func.func @_convblock_kernel(%arg0: i32, %arg1: memref<1x16x64xf32, #tpu.memory_space<vmem>>, %arg2: memref<3x64x128xbf16, #tpu.memory_space<vmem>>, %arg3: memref<3x128x128xbf16, #tpu.memory_space<vmem>>, %arg4: memref<2x128xf32, #tpu.memory_space<vmem>>, %arg5: memref<1x16x128xf32, #tpu.memory_space<vmem>>) attributes {dimension_semantics = [#tpu.dimension_semantics<parallel>], iteration_bounds = array<i64: 2>, scalar_prefetch = 0 : i64, scratch_operands = 0 : i64, tpu.core_type = #tpu.core_type<tc>, window_params = [{transform_indices = @transform_0, window_bounds = array<i64: 1, 16, 64>}, {pipeline_mode = #tpu.pipeline_mode<synchronous>, transform_indices = @transform_1, window_bounds = array<i64: 3, 64, 128>}, {pipeline_mode = #tpu.pipeline_mode<synchronous>, transform_indices = @transform_2, window_bounds = array<i64: 3, 128, 128>}, {pipeline_mode = #tpu.pipeline_mode<synchronous>, transform_indices = @transform_3, window_bounds = array<i64: 2, 128>}, {transform_indices = @transform_4, window_bounds = array<i64: 1, 16, 128>}]} {
    %c0 = arith.constant 0 : index
    %c0_0 = arith.constant 0 : index
    %c0_1 = arith.constant 0 : index
    %0 = vector.load %arg1[%c0, %c0_0, %c0_1] : memref<1x16x64xf32, #tpu.memory_space<vmem>>, vector<1x16x64xf32>
    %1 = vector.shape_cast %0 : vector<1x16x64xf32> to vector<16x64xf32>
    %2 = tpu.iota {dimensions = array<i32: 0>} : vector<16x64xi32>
    %c0_i32 = arith.constant 0 : i32
    %3 = vector.broadcast %c0_i32 : i32 to vector<16x64xi32>
    %4 = arith.cmpi ne, %2, %3 : vector<16x64xi32>
    %c15_i32 = arith.constant 15 : i32
    %5 = vector.broadcast %c15_i32 : i32 to vector<16x64xi32>
    %6 = arith.cmpi ne, %2, %5 : vector<16x64xi32>
    %c1_i32 = arith.constant 1 : i32
    %7 = tpu.dynamic_rotate %1 by %c1_i32 dim 0 : vector<16x64xf32>, i32 -> vector<16x64xf32>
    %cst = arith.constant 0.000000e+00 : f32
    %8 = vector.broadcast %cst : f32 to vector<16x64xf32>
    %9 = arith.select %4, %7, %8 : vector<16x64xi1>, vector<16x64xf32>
    %c15_i32_2 = arith.constant 15 : i32
    %10 = tpu.dynamic_rotate %1 by %c15_i32_2 dim 0 : vector<16x64xf32>, i32 -> vector<16x64xf32>
    %cst_3 = arith.constant 0.000000e+00 : f32
    %11 = vector.broadcast %cst_3 : f32 to vector<16x64xf32>
    %12 = arith.select %6, %10, %11 : vector<16x64xi1>, vector<16x64xf32>
    %13 = arith.truncf %9 : vector<16x64xf32> to vector<16x64xbf16>
    %c0_4 = arith.constant 0 : index
    %c0_5 = arith.constant 0 : index
    %c0_6 = arith.constant 0 : index
    %14 = vector.load %arg2[%c0_4, %c0_5, %c0_6] : memref<3x64x128xbf16, #tpu.memory_space<vmem>>, vector<1x64x128xbf16>
    %15 = vector.shape_cast %14 : vector<1x64x128xbf16> to vector<64x128xbf16>
    %cst_7 = arith.constant dense<0.000000e+00> : vector<16x128xf32>
    %16 = tpu.matmul %13, %15, %cst_7 {dimension_numbers = #tpu.dot_dimension_numbers<[1], [0], [0], [1], [0, 0, 1, 1], [], []>} : vector<16x64xbf16>, vector<64x128xbf16>, vector<16x128xf32> -> vector<16x128xf32>
    %17 = arith.truncf %1 : vector<16x64xf32> to vector<16x64xbf16>
    %c1 = arith.constant 1 : index
    %c0_8 = arith.constant 0 : index
    %c0_9 = arith.constant 0 : index
    %18 = vector.load %arg2[%c1, %c0_8, %c0_9] : memref<3x64x128xbf16, #tpu.memory_space<vmem>>, vector<1x64x128xbf16>
    %19 = vector.shape_cast %18 : vector<1x64x128xbf16> to vector<64x128xbf16>
    %cst_10 = arith.constant dense<0.000000e+00> : vector<16x128xf32>
    %20 = tpu.matmul %17, %19, %cst_10 {dimension_numbers = #tpu.dot_dimension_numbers<[1], [0], [0], [1], [0, 0, 1, 1], [], []>} : vector<16x64xbf16>, vector<64x128xbf16>, vector<16x128xf32> -> vector<16x128xf32>
    %21 = arith.addf %16, %20 : vector<16x128xf32>
    %22 = arith.truncf %12 : vector<16x64xf32> to vector<16x64xbf16>
    %c2 = arith.constant 2 : index
    %c0_11 = arith.constant 0 : index
    %c0_12 = arith.constant 0 : index
    %23 = vector.load %arg2[%c2, %c0_11, %c0_12] : memref<3x64x128xbf16, #tpu.memory_space<vmem>>, vector<1x64x128xbf16>
    %24 = vector.shape_cast %23 : vector<1x64x128xbf16> to vector<64x128xbf16>
    %cst_13 = arith.constant dense<0.000000e+00> : vector<16x128xf32>
    %25 = tpu.matmul %22, %24, %cst_13 {dimension_numbers = #tpu.dot_dimension_numbers<[1], [0], [0], [1], [0, 0, 1, 1], [], []>} : vector<16x64xbf16>, vector<64x128xbf16>, vector<16x128xf32> -> vector<16x128xf32>
    %26 = arith.addf %21, %25 : vector<16x128xf32>
    %c0_14 = arith.constant 0 : index
    %c0_15 = arith.constant 0 : index
    %27 = vector.load %arg4[%c0_14, %c0_15] : memref<2x128xf32, #tpu.memory_space<vmem>>, vector<1x128xf32>
    %28 = vector.broadcast %27 : vector<1x128xf32> to vector<16x128xf32>
    %29 = arith.addf %26, %28 : vector<16x128xf32>
    %cst_16 = arith.constant 0.000000e+00 : f32
    %30 = vector.broadcast %cst_16 : f32 to vector<16x128xf32>
    %31 = arith.maximumf %29, %30 : vector<16x128xf32>
    %32 = tpu.iota {dimensions = array<i32: 0>} : vector<16x128xi32>
    %c0_i32_17 = arith.constant 0 : i32
    %33 = vector.broadcast %c0_i32_17 : i32 to vector<16x128xi32>
    %34 = arith.cmpi ne, %32, %33 : vector<16x128xi32>
    %c15_i32_18 = arith.constant 15 : i32
    %35 = vector.broadcast %c15_i32_18 : i32 to vector<16x128xi32>
    %36 = arith.cmpi ne, %32, %35 : vector<16x128xi32>
    %c1_i32_19 = arith.constant 1 : i32
    %37 = tpu.dynamic_rotate %31 by %c1_i32_19 dim 0 : vector<16x128xf32>, i32 -> vector<16x128xf32>
    %cst_20 = arith.constant 0.000000e+00 : f32
    %38 = vector.broadcast %cst_20 : f32 to vector<16x128xf32>
    %39 = arith.select %34, %37, %38 : vector<16x128xi1>, vector<16x128xf32>
    %c15_i32_21 = arith.constant 15 : i32
    %40 = tpu.dynamic_rotate %31 by %c15_i32_21 dim 0 : vector<16x128xf32>, i32 -> vector<16x128xf32>
    %cst_22 = arith.constant 0.000000e+00 : f32
    %41 = vector.broadcast %cst_22 : f32 to vector<16x128xf32>
    %42 = arith.select %36, %40, %41 : vector<16x128xi1>, vector<16x128xf32>
    %43 = arith.truncf %39 : vector<16x128xf32> to vector<16x128xbf16>
    %c0_23 = arith.constant 0 : index
    %c0_24 = arith.constant 0 : index
    %c0_25 = arith.constant 0 : index
    %44 = vector.load %arg3[%c0_23, %c0_24, %c0_25] : memref<3x128x128xbf16, #tpu.memory_space<vmem>>, vector<1x128x128xbf16>
    %45 = vector.shape_cast %44 : vector<1x128x128xbf16> to vector<128x128xbf16>
    %cst_26 = arith.constant dense<0.000000e+00> : vector<16x128xf32>
    %46 = tpu.matmul %43, %45, %cst_26 {dimension_numbers = #tpu.dot_dimension_numbers<[1], [0], [0], [1], [0, 0, 1, 1], [], []>} : vector<16x128xbf16>, vector<128x128xbf16>, vector<16x128xf32> -> vector<16x128xf32>
    %47 = arith.truncf %31 : vector<16x128xf32> to vector<16x128xbf16>
    %c1_27 = arith.constant 1 : index
    %c0_28 = arith.constant 0 : index
    %c0_29 = arith.constant 0 : index
    %48 = vector.load %arg3[%c1_27, %c0_28, %c0_29] : memref<3x128x128xbf16, #tpu.memory_space<vmem>>, vector<1x128x128xbf16>
    %49 = vector.shape_cast %48 : vector<1x128x128xbf16> to vector<128x128xbf16>
    %cst_30 = arith.constant dense<0.000000e+00> : vector<16x128xf32>
    %50 = tpu.matmul %47, %49, %cst_30 {dimension_numbers = #tpu.dot_dimension_numbers<[1], [0], [0], [1], [0, 0, 1, 1], [], []>} : vector<16x128xbf16>, vector<128x128xbf16>, vector<16x128xf32> -> vector<16x128xf32>
    %51 = arith.addf %46, %50 : vector<16x128xf32>
    %52 = arith.truncf %42 : vector<16x128xf32> to vector<16x128xbf16>
    %c2_31 = arith.constant 2 : index
    %c0_32 = arith.constant 0 : index
    %c0_33 = arith.constant 0 : index
    %53 = vector.load %arg3[%c2_31, %c0_32, %c0_33] : memref<3x128x128xbf16, #tpu.memory_space<vmem>>, vector<1x128x128xbf16>
    %54 = vector.shape_cast %53 : vector<1x128x128xbf16> to vector<128x128xbf16>
    %cst_34 = arith.constant dense<0.000000e+00> : vector<16x128xf32>
    %55 = tpu.matmul %52, %54, %cst_34 {dimension_numbers = #tpu.dot_dimension_numbers<[1], [0], [0], [1], [0, 0, 1, 1], [], []>} : vector<16x128xbf16>, vector<128x128xbf16>, vector<16x128xf32> -> vector<16x128xf32>
    %56 = arith.addf %51, %55 : vector<16x128xf32>
    %c1_35 = arith.constant 1 : index
    %c0_36 = arith.constant 0 : index
    %57 = vector.load %arg4[%c1_35, %c0_36] : memref<2x128xf32, #tpu.memory_space<vmem>>, vector<1x128xf32>
    %58 = vector.broadcast %57 : vector<1x128xf32> to vector<16x128xf32>
    %59 = arith.addf %56, %58 : vector<16x128xf32>
    %cst_37 = arith.constant 0.000000e+00 : f32
    %60 = vector.broadcast %cst_37 : f32 to vector<16x128xf32>
    %61 = arith.maximumf %59, %60 : vector<16x128xf32>
    %c0_38 = arith.constant 0 : index
    %c0_39 = arith.constant 0 : index
    %c0_40 = arith.constant 0 : index
    %62 = vector.load %arg5[%c0_38, %c0_39, %c0_40] : memref<1x16x128xf32, #tpu.memory_space<vmem>>, vector<1x16x128xf32>
    %63 = vector.shape_cast %62 : vector<1x16x128xf32> to vector<16x128xf32>
    %64 = vector.shape_cast %61 : vector<16x128xf32> to vector<1x16x128xf32>
    tpu.vector_store %arg5[%c0_38, %c0_39, %c0_40], %64 {strides = array<i32>} : memref<1x16x128xf32, #tpu.memory_space<vmem>>, vector<1x16x128xf32>,
    return
  }
  func.func @transform_0(%arg0: i32) -> (i32, i32, i32) {
    %c0_i32 = arith.constant 0 : i32
    %c0_i32_0 = arith.constant 0 : i32
    %c0_i32_1 = arith.constant 0 : i32
    return %arg0, %c0_i32, %c0_i32_0 : i32, i32, i32
  }
  func.func @transform_1(%arg0: i32) -> (i32, i32, i32) {
    %c0_i32 = arith.constant 0 : i32
    %c0_i32_0 = arith.constant 0 : i32
    %c0_i32_1 = arith.constant 0 : i32
    %c0_i32_2 = arith.constant 0 : i32
    return %c0_i32, %c0_i32_0, %c0_i32_1 : i32, i32, i32
  }
  func.func @transform_2(%arg0: i32) -> (i32, i32, i32) {
    %c0_i32 = arith.constant 0 : i32
    %c0_i32_0 = arith.constant 0 : i32
    %c0_i32_1 = arith.constant 0 : i32
    %c0_i32_2 = arith.constant 0 : i32
    return %c0_i32, %c0_i32_0, %c0_i32_1 : i32, i32, i32
  }
  func.func @transform_3(%arg0: i32) -> (i32, i32) {
    %c0_i32 = arith.constant 0 : i32
    %c0_i32_0 = arith.constant 0 : i32
    %c0_i32_1 = arith.constant 0 : i32
    return %c0_i32, %c0_i32_0 : i32, i32
  }
  func.func @transform_4(%arg0: i32) -> (i32, i32, i32) {
    %c0_i32 = arith.constant 0 : i32
    %c0_i32_0 = arith.constant 0 : i32
    %c0_i32_1 = arith.constant 0 : i32
    return %arg0, %c0_i32, %c0_i32_0 : i32, i32, i32
  }
}

</mosaic_0001>

<llo_original>
// kernel: tpu_custom_call.1
$region0: #{tpu_custom_call.1}
  #allocation0 [shape = 'u32[]', space=smem, size = 0x4, offset = 0x4, fixed_abs, tag = 'smem constant byte address 0x4 - core index']
  #allocation1 [shape = 'u32[144,128]{1,0:T(1,128)}', space=vmem, size = 0x12000, scoped, tag = 'internal scratch']
  %s0 = inlined_call_operand.hbm [shape: f32[2,16,64], index: 0, kind: input, shape index: {}]
  %s1 = inlined_call_operand.hbm [shape: bf16[3,64,128], index: 1, kind: input, shape index: {}]
  %s2 = inlined_call_operand.hbm [shape: bf16[3,128,128], index: 2, kind: input, shape index: {}]
  %s3 = inlined_call_operand.vmem [shape: f32[2,128], index: 3, kind: input, shape index: {}]
  %s4 = inlined_call_operand.hbm [shape: f32[2,16,128], index: 4, kind: output, shape index: {}]
  %s5 = sld [smem:[#allocation0]]
  $region61: #{tpu_custom_call.1} parent=0
    _
  %s7 = ssub.s32 1, %s5
  %s8 = scalar_select 0, %s7, %s5
  $region1: #{tpu_custom_call.1} parent=0
    #allocation2 [shape = 'u8[16384]{0}', space=vmem, size = 0x4000, scoped, tag = 'input window, operand 0']
    #allocation3 [shape = 's32[2]{0}', space=sflag, size = 0x8, scoped, tag = 'scoped memory for tpu_custom_call.1']
    #allocation4 [shape = 's32[2]{0}', space=sflag, size = 0x8, scoped, tag = 'scoped memory for tpu_custom_call.1']
    #allocation5 [shape = 'u8[49152]{0}', space=vmem, size = 0xc000, scoped, tag = 'input window, operand 1, single buffered']
    #allocation6 [shape = 's32[1]{0}', space=sflag, size = 0x4, scoped, tag = 'scoped memory for tpu_custom_call.1']
    #allocation7 [shape = 'u8[98304]{0}', space=vmem, size = 0x18000, scoped, tag = 'input window, operand 2, single buffered']
    #allocation8 [shape = 'u8[16384]{0}', space=vmem, size = 0x4000, scoped, tag = 'output window, operand 0']
    %9 = vsyncpa [#allocation3], 0
    %s10 = scalar_lea.sflag [#allocation3], 1
    %11 = vsyncpa %s10, 0
    %12 = vsyncpa [#allocation6], 0
    %13 = vsyncpa [#allocation4], 0
    %s14 = scalar_lea.sflag [#allocation4], 1
    %15 = vsyncpa %s14, 0
    loop: start=0, step=1, limit=4
    $region2: #{tpu_custom_call.1} parent=1 // loop_pre_header
      _
    $region3: #{tpu_custom_call.1} parent=1 // loop_header
      %s17 = sphi 0, %s21
      %p18 = scmp.ge.s32.totalorder %s17, 4
      %s27 = sphi 0, %s29
      %s30 = sphi 0, %s27
      %s31 = sphi 0, %s30
      %s47 = sphi 0, %s31
      %s51 = sphi 0, %s51
      %s53 = sphi 0, %s51
      %s54 = sphi 0, %s53
      %s68 = sphi 0, %s54
      %s72 = sphi 0, %s72
      %s74 = sphi 0, %s72
      %s75 = sphi 0, %s74
      %s89 = sphi 0, %s75
      %s93 = sphi 0, %s93
      %s95 = sphi 0, %s93
      %s96 = sphi 0, %s95
      %s110 = sphi 0, %s96
      %s116 = sphi 0, %s118
      %s119 = sphi 0, %s116
      %s120 = sphi 0, %s119
      %s136 = sphi 0, %s120
    $region4: #{tpu_custom_call.1} parent=1 // loop_header_branch
      %20 = sbr.rel (%p18) target = $region8
    $region5: #{tpu_custom_call.1} parent=1 // loop_body
      %s22 = ssub.s32 %s17, 1
      %s23 = ssub.s32 %s17, 2
      %s24 = sadd.s32 %s17, 1
      %s25 = ssub.s32 %s17, %s24
      %p26 = scmp.eq.s32.totalorder %s25, 0
      %s28 = sadd.s32 %s27, 1
      %s29 = scalar_select %p26, %s27, %s28
      %p32 = pneg %p26
      %p33 = scmp.eq.s32.totalorder %s17, 1
      %p34 = por %p32, %p33
      %p35 = scmp.ne.s32.totalorder %s27, %s30
      %p36 = scmp.eq.s32.totalorder %s17, 0
      %p37 = por %p35, %p36
      %p38 = scmp.ne.s32.totalorder %s27, %s30
      %p39 = scmp.eq.s32.totalorder %s22, 1
      %p40 = por %p38, %p39
      %p41 = scmp.ne.s32.totalorder %s30, %s31
      %p42 = scmp.eq.s32.totalorder %s22, 0
      %p43 = por %p41, %p42
      %p44 = scmp.ne.s32.totalorder %s30, %s31
      %p45 = scmp.eq.s32.totalorder %s23, 1
      %p46 = por %p44, %p45
      %p48 = scmp.ne.s32.totalorder %s31, %s47
      %p49 = scmp.eq.s32.totalorder %s23, 0
      %p50 = por %p48, %p49
      %s52 = sadd.s32 %s51, 1
      %p55 = scmp.eq.s32.totalorder %s17, 1
      %p56 = scmp.ne.s32.totalorder %s51, %s53
      %p57 = scmp.eq.s32.totalorder %s17, 0
      %p58 = por %p56, %p57
      %p59 = scmp.ne.s32.totalorder %s51, %s53
      %p60 = scmp.eq.s32.totalorder %s22, 1
      %p61 = por %p59, %p60
      %p62 = scmp.ne.s32.totalorder %s53, %s54
      %p63 = scmp.eq.s32.totalorder %s22, 0
      %p64 = por %p62, %p63
      %p65 = scmp.ne.s32.totalorder %s53, %s54
      %p66 = scmp.eq.s32.totalorder %s23, 1
      %p67 = por %p65, %p66
      %p69 = scmp.ne.s32.totalorder %s54, %s68
      %p70 = scmp.eq.s32.totalorder %s23, 0
      %p71 = por %p69, %p70
      %s73 = sadd.s32 %s72, 1
      %p76 = scmp.eq.s32.totalorder %s17, 1
      %p77 = scmp.ne.s32.totalorder %s72, %s74
      %p78 = scmp.eq.s32.totalorder %s17, 0
      %p79 = por %p77, %p78
      %p80 = scmp.ne.s32.totalorder %s72, %s74
      %p81 = scmp.eq.s32.totalorder %s22, 1
      %p82 = por %p80, %p81
      %p83 = scmp.ne.s32.totalorder %s74, %s75
      %p84 = scmp.eq.s32.totalorder %s22, 0
      %p85 = por %p83, %p84
      %p86 = scmp.ne.s32.totalorder %s74, %s75
      %p87 = scmp.eq.s32.totalorder %s23, 1
      %p88 = por %p86, %p87
      %p90 = scmp.ne.s32.totalorder %s75, %s89
      %p91 = scmp.eq.s32.totalorder %s23, 0
      %p92 = por %p90, %p91
      %s94 = sadd.s32 %s93, 1
      %p97 = scmp.eq.s32.totalorder %s17, 1
      %p98 = scmp.ne.s32.totalorder %s93, %s95
      %p99 = scmp.eq.s32.totalorder %s17, 0
      %p100 = por %p98, %p99
      %p101 = scmp.ne.s32.totalorder %s93, %s95
      %p102 = scmp.eq.s32.totalorder %s22, 1
      %p103 = por %p101, %p102
      %p104 = scmp.ne.s32.totalorder %s95, %s96
      %p105 = scmp.eq.s32.totalorder %s22, 0
      %p106 = por %p104, %p105
      %p107 = scmp.ne.s32.totalorder %s95, %s96
      %p108 = scmp.eq.s32.totalorder %s23, 1
      %p109 = por %p107, %p108
      %p111 = scmp.ne.s32.totalorder %s96, %s110
      %p112 = scmp.eq.s32.totalorder %s23, 0
      %p113 = por %p111, %p112
      %s114 = ssub.s32 %s17, %s24
      %p115 = scmp.eq.s32.totalorder %s114, 0
      %s117 = sadd.s32 %s116, 1
      %s118 = scalar_select %p115, %s116, %s117
      %p121 = pneg %p115
      %p122 = scmp.eq.s32.totalorder %s17, 1
      %p123 = por %p121, %p122
      %p124 = scmp.ne.s32.totalorder %s116, %s119
      %p125 = scmp.eq.s32.totalorder %s17, 0
      %p126 = por %p124, %p125
      %p127 = scmp.ne.s32.totalorder %s116, %s119
      %p128 = scmp.eq.s32.totalorder %s22, 1
      %p129 = por %p127, %p128
      %p130 = scmp.ne.s32.totalorder %s119, %s120
      %p131 = scmp.eq.s32.totalorder %s22, 0
      %p132 = por %p130, %p131
      %p133 = scmp.ne.s32.totalorder %s119, %s120
      %p134 = scmp.eq.s32.totalorder %s23, 1
      %p135 = por %p133, %p134
      %p137 = scmp.ne.s32.totalorder %s120, %s136
      %p138 = scmp.eq.s32.totalorder %s23, 0
      %p139 = por %p137, %p138
      %p140 = scmp.le.s32.totalorder 1, %s17
      %p141 = scmp.lt.s32.totalorder %s17, 3
      %p142 = pnand %p140, %p141
      %p143 = pneg %p142
      // Predicated region
      $region9: #{tpu_custom_call.1} parent=5 // pred_check
        _
      $region10: #{tpu_custom_call.1} parent=5 // pred_check_branch
        %145 = sbr.rel (%p142) target = $region12
      $region11: #{tpu_custom_call.1} parent=5 // pred_region
        %s146 = ssub.s32 %s17, 1
        // Predicated region
        $region13: #{tpu_custom_call.1} parent=11 // pred_check
          %p147 = pneg %p64
        $region14: #{tpu_custom_call.1} parent=11 // pred_check_branch
          %149 = sbr.rel (%p147) target = $region16
        $region15: #{tpu_custom_call.1} parent=11 // pred_region
          %s151 = ssub.s32 1536, 1536
          %152 = vsyncadd [#allocation6], %s151
          %s153 = sshll.u32 [#allocation5], 4
          %s154 = int_to_ptr.vmem [resolvable:$true] %s153
          %159 = dma.hbm_to_vmem [thread:$0]  %s1, 1536, %s154, [#allocation6], 64, 64, 4
        $region16: #{tpu_custom_call.1} parent=11 // pred_fallthru
          _
        // Predicated region
        $region17: #{tpu_custom_call.1} parent=11 // pred_check
          %p160 = pneg %p85
        $region18: #{tpu_custom_call.1} parent=11 // pred_check_branch
          %162 = sbr.rel (%p160) target = $region20
        $region19: #{tpu_custom_call.1} parent=11 // pred_region
          %s164 = ssub.s32 3072, 3072
          %165 = vsyncadd [#allocation6], %s164
          %s166 = sshll.u32 [#allocation7], 4
          %s167 = int_to_ptr.vmem [resolvable:$true] %s166
          %172 = dma.hbm_to_vmem [thread:$0]  %s2, 3072, %s167, [#allocation6], 64, 64, 4
        $region20: #{tpu_custom_call.1} parent=11 // pred_fallthru
          _
        // Predicated region
        $region21: #{tpu_custom_call.1} parent=11 // pred_check
          %p173 = pneg %p106
        $region22: #{tpu_custom_call.1} parent=11 // pred_check_branch
          %175 = sbr.rel (%p173) target = $region24
        $region23: #{tpu_custom_call.1} parent=11 // pred_region
          _
        $region24: #{tpu_custom_call.1} parent=11 // pred_fallthru
          _
      $region12: #{tpu_custom_call.1} parent=5 // pred_fallthru
        _
      %p176 = scmp.lt.s32.totalorder %s17, 2
      // Predicated region
      $region25: #{tpu_custom_call.1} parent=5 // pred_check
        %p177 = pneg %p176
      $region26: #{tpu_custom_call.1} parent=5 // pred_check_branch
        %179 = sbr.rel (%p177) target = $region28
      $region27: #{tpu_custom_call.1} parent=5 // pred_region
        // Predicated region
        $region29: #{tpu_custom_call.1} parent=27 // pred_check
          %p180 = pneg %p37
        $region30: #{tpu_custom_call.1} parent=27 // pred_check_branch
          %182 = sbr.rel (%p180) target = $region32
        $region31: #{tpu_custom_call.1} parent=27 // pred_region
          %s183 = sand.u32 %s27, 1
          %s184 = scalar_lea.sflag [#allocation3], %s183
          %s185 = sand.u32 %s27, 1
          %s186 = smul.addr %s185, 16
          %s187 = scalar_lea.vmem [#allocation2], %s186
          %s189 = ssub.s32 256, 256
          %190 = vsyncadd %s184, %s189
          %s191 = smul.addr %s17, 2
          %s192 = smul.addr %s191, 128
          %s193 = scalar_lea.hbm %s0, %s192
          %s194 = sshll.u32 %s187, 4
          %s195 = int_to_ptr.vmem [resolvable:$true] %s194
          %200 = dma.hbm_to_vmem [thread:$0]  %s193, 256, %s195, %s184, 128, 128, 8
        $region32: #{tpu_custom_call.1} parent=27 // pred_fallthru
          _
      $region28: #{tpu_custom_call.1} parent=5 // pred_fallthru
        _
      %p201 = scmp.le.s32.totalorder 1, %s17
      %p202 = scmp.lt.s32.totalorder %s17, 3
      %p203 = pnand %p201, %p202
      %p204 = pneg %p203
      // Predicated region
      $region33: #{tpu_custom_call.1} parent=5 // pred_check
        _
      $region34: #{tpu_custom_call.1} parent=5 // pred_check_branch
        %206 = sbr.rel (%p203) target = $region36
      $region35: #{tpu_custom_call.1} parent=5 // pred_region
        %s207 = ssub.s32 %s17, 1
        %s208 = sand.u32 %s30, 1
        %s209 = scalar_lea.sflag [#allocation3], %s208
        %s210 = sand.u32 %s30, 1
        %s211 = smul.addr %s210, 16
        %s212 = scalar_lea.vmem [#allocation2], %s211
        // Predicated region
        $region37: #{tpu_custom_call.1} parent=35 // pred_check
          %p213 = pneg %p43
        $region38: #{tpu_custom_call.1} parent=35 // pred_check_branch
          %215 = sbr.rel (%p213) target = $region40
        $region39: #{tpu_custom_call.1} parent=35 // pred_region
          %216 = dma.done %s209, 256
        $region40: #{tpu_custom_call.1} parent=35 // pred_fallthru
          _
        // Predicated region
        $region41: #{tpu_custom_call.1} parent=35 // pred_check
          %p217 = pneg %p64
        $region42: #{tpu_custom_call.1} parent=35 // pred_check_branch
          %219 = sbr.rel (%p217) target = $region44
        $region43: #{tpu_custom_call.1} parent=35 // pred_region
          %220 = dma.done [#allocation6], 1536
        $region44: #{tpu_custom_call.1} parent=35 // pred_fallthru
          _
        // Predicated region
        $region45: #{tpu_custom_call.1} parent=35 // pred_check
          %p221 = pneg %p85
        $region46: #{tpu_custom_call.1} parent=35 // pred_check_branch
          %223 = sbr.rel (%p221) target = $region48
        $region47: #{tpu_custom_call.1} parent=35 // pred_region
          %224 = dma.done [#allocation6], 3072
        $region48: #{tpu_custom_call.1} parent=35 // pred_fallthru
          _
        %s225 = sand.u32 %s30, 1
        %s226 = scalar_lea.sflag [#allocation3], %s225
        %s227 = sand.u32 %s30, 1
        %s228 = smul.addr %s227, 16
        %s229 = scalar_lea.vmem [#allocation2], %s228
        %p230 = pneg %p43
        %p231 = pneg %p40
        %p232 = pneg %p64
        %p233 = pneg %p61
        %p234 = pneg %p85
        %p235 = pneg %p82
        %p236 = pneg %p106
        %p237 = pneg %p103
        %p238 = pneg %p132
        %p239 = pneg %p129
        %s240 = sand.u32 %s119, 1
        %s241 = scalar_lea.sflag [#allocation4], %s240
        %s242 = sand.u32 %s119, 1
        %s243 = smul.addr %s242, 16
        %s244 = scalar_lea.vmem [#allocation8], %s243
        %v246 = vld [vmem:[%s212] sm:$0xff]
        %v247 = vld [vmem:[%s212 + $0x8] sm:$0xff]
        %v248 = vlaneseq
        %v249 = vshrl.u32 %v248, 7
        %v250 = vadd.s32 %v249, 8
        %vm251 = vcmp.ne.s32.totalorder %v249, 0
        %vm252 = vcmp.ne.s32.totalorder %v250, 0
        %vm253 = vcmp.ne.s32.totalorder %v249, 15
        %vm254 = vcmp.ne.s32.totalorder %v250, 15
        %v255 = vrot.slane %v246, 7
        %v256 = vrot.slane %v247, 7
        %vm257 = vcmp.lt.s32.totalorder %v249, 1
        %v258 = vsel %vm257, %v255, %v256
        %v259 = vsel %vm257, %v256, %v255
        %v260 = vsel %vm251, %v259, 0.0
        %v261 = vsel %vm252, %v258, 0.0
        %v262 = vrot.slane %v246, 1
        %v263 = vrot.slane %v247, 1
        %vm264 = vcmp.lt.s32.totalorder %v249, 7
        %v265 = vsel %vm264, %v262, %v263
        %v266 = vsel %vm264, %v263, %v262
        %v267 = vsel %vm253, %v265, 0.0
        %v268 = vsel %vm254, %v266, 0.0
        %v269 = vpack.c.bf16 %v261, %v260
        %v270 = vld [vmem:[#allocation5] sm:$0xf]
        %v271 = vld [vmem:[#allocation5 + $0x4] sm:$0xf]
        %v272 = vld [vmem:[#allocation5 + $0x8] sm:$0xf]
        %v273 = vld [vmem:[#allocation5 + $0xc] sm:$0xf]
        %v274 = vld [vmem:[#allocation5 + $0x10] sm:$0xf]
        %v275 = vld [vmem:[#allocation5 + $0x14] sm:$0xf]
        %v276 = vld [vmem:[#allocation5 + $0x18] sm:$0xf]
        %v277 = vld [vmem:[#allocation5 + $0x1c] sm:$0xf]
        %v278 = vpack.c.bf16 %v247, %v246
        %s279 = scalar_lea.vmem [#allocation5], 32
        %v280 = vld [vmem:[%s279] sm:$0xf]
        %v281 = vld [vmem:[%s279 + $0x4] sm:$0xf]
        %v282 = vld [vmem:[%s279 + $0x8] sm:$0xf]
        %v283 = vld [vmem:[%s279 + $0xc] sm:$0xf]
        %v284 = vld [vmem:[%s279 + $0x10] sm:$0xf]
        %v285 = vld [vmem:[%s279 + $0x14] sm:$0xf]
        %v286 = vld [vmem:[%s279 + $0x18] sm:$0xf]
        %v287 = vld [vmem:[%s279 + $0x1c] sm:$0xf]
        %v296 = vunpack.c.l.b16 %v280
        %v297 = vunpack.c.l.b16 %v281
        %v298 = vunpack.c.l.b16 %v282
        %v299 = vunpack.c.l.b16 %v283
        %v300 = vunpack.c.l.b16 %v284
        %v301 = vunpack.c.l.b16 %v285
        %v302 = vunpack.c.l.b16 %v286
        %v303 = vunpack.c.l.b16 %v287
        %v304 = vpack.c.b16 %v297, %v296
        %v305 = vpack.c.b16 %v299, %v298
        %v306 = vpack.c.b16 %v301, %v300
        %v307 = vpack.c.b16 %v303, %v302
        %vm312 = vcmask 523264
        %v314 = vsel %vm312, %v278, 0
        %316 = vmatprep.subr.bf16.mxu0 0
        %317 = vmatpush1.bf16.msra.mxu0 %v304
        %318 = vmatprep.subr.bf16.mxu0 0
        %319 = vmatpush1.bf16.msra.mxu0 %v305
        %320 = vmatprep.subr.bf16.mxu0 0
        %321 = vmatpush1.bf16.msra.mxu0 %v306
        %322 = vmatprep.subr.bf16.mxu0 0
        %323 = vmatpush1.bf16.msra.mxu0 %v307
        %324 = vmatprep.subr.bf16.mxu0 0
        %325 = vmatpush1.bf16.msra.mxu0 0
        %326 = vmatprep.subr.bf16.mxu0 0
        %327 = vmatpush1.bf16.msra.mxu0 0
        %328 = vmatprep.subr.bf16.mxu0 0
        %329 = vmatpush1.bf16.msra.mxu0 0
        %330 = vmatprep.subr.bf16.mxu0 0
        %331 = vmatpush1.bf16.msra.mxu0 0
        %332 = vmatprep.subr.bf16.mxu0 0
        %333 = vmatpush1.bf16.msra.mxu0 0
        %334 = vmatprep.subr.bf16.mxu0 0
        %335 = vmatpush1.bf16.msra.mxu0 0
        %336 = vmatprep.subr.bf16.mxu0 0
        %337 = vmatpush1.bf16.msra.mxu0 0
        %338 = vmatprep.subr.bf16.mxu0 0
        %339 = vmatpush1.bf16.msra.mxu0 0
        %340 = vmatprep.subr.bf16.mxu0 0
        %341 = vmatpush1.bf16.msra.mxu0 0
        %342 = vmatprep.subr.bf16.mxu0 0
        %343 = vmatpush1.bf16.msra.mxu0 0
        %344 = vmatprep.subr.bf16.mxu0 0
        %345 = vmatpush1.bf16.msra.mxu0 0
        %346 = vmatprep.subr.bf16.mxu0 0
        %347 = vmatpush1.bf16.msra.mxu0 0
        %348 = vmatprep.mubr.bf16.mxu0 0
        %349 = vmatmul.mubr.bf16.gmra.mrb[0].mxu0 %v314
        %v350 = vpop.f32.mrb[0].mxu0
        %v351 = vadd.f32 0.0, %v350
        %v352 = vpop.f32.mrb[0].mxu0
        %v353 = vpop.f32.mrb[0].mxu0
        %v354 = vadd.f32 0.0, %v353
        %v355 = vpop.f32.mrb[0].mxu0
        %356 = vdwg.mxu0
        %v365 = vunpack.c.l.b16 %v270
        %v366 = vunpack.c.l.b16 %v271
        %v367 = vunpack.c.l.b16 %v272
        %v368 = vunpack.c.l.b16 %v273
        %v369 = vunpack.c.l.b16 %v274
        %v370 = vunpack.c.l.b16 %v275
        %v371 = vunpack.c.l.b16 %v276
        %v372 = vunpack.c.l.b16 %v277
        %v373 = vpack.c.b16 %v366, %v365
        %v374 = vpack.c.b16 %v368, %v367
        %v375 = vpack.c.b16 %v370, %v369
        %v376 = vpack.c.b16 %v372, %v371
        %v382 = vsel %vm312, %v269, 0
        %384 = vmatprep.subr.bf16.mxu0 0
        %385 = vmatpush1.bf16.msra.mxu0 %v373
        %386 = vmatprep.subr.bf16.mxu0 0
        %387 = vmatpush1.bf16.msra.mxu0 %v374
        %388 = vmatprep.subr.bf16.mxu0 0
        %389 = vmatpush1.bf16.msra.mxu0 %v375
        %390 = vmatprep.subr.bf16.mxu0 0
        %391 = vmatpush1.bf16.msra.mxu0 %v376
        %392 = vmatprep.subr.bf16.mxu0 0
        %393 = vmatpush1.bf16.msra.mxu0 0
        %394 = vmatprep.subr.bf16.mxu0 0
        %395 = vmatpush1.bf16.msra.mxu0 0
        %396 = vmatprep.subr.bf16.mxu0 0
        %397 = vmatpush1.bf16.msra.mxu0 0
        %398 = vmatprep.subr.bf16.mxu0 0
        %399 = vmatpush1.bf16.msra.mxu0 0
        %400 = vmatprep.subr.bf16.mxu0 0
        %401 = vmatpush1.bf16.msra.mxu0 0
        %402 = vmatprep.subr.bf16.mxu0 0
        %403 = vmatpush1.bf16.msra.mxu0 0
        %404 = vmatprep.subr.bf16.mxu0 0
        %405 = vmatpush1.bf16.msra.mxu0 0
        %406 = vmatprep.subr.bf16.mxu0 0
        %407 = vmatpush1.bf16.msra.mxu0 0
        %408 = vmatprep.subr.bf16.mxu0 0
        %409 = vmatpush1.bf16.msra.mxu0 0
        %410 = vmatprep.subr.bf16.mxu0 0
        %411 = vmatpush1.bf16.msra.mxu0 0
        %412 = vmatprep.subr.bf16.mxu0 0
        %413 = vmatpush1.bf16.msra.mxu0 0
        %414 = vmatprep.subr.bf16.mxu0 0
        %415 = vmatpush1.bf16.msra.mxu0 0
        %416 = vmatprep.mubr.bf16.mxu0 0
        %417 = vmatmul.mubr.bf16.gmra.mrb[0].mxu0 %v382
        %v418 = vpop.f32.mrb[0].mxu0
        %v419 = vadd.f32 %v351, %v418
        %v420 = vpop.f32.mrb[0].mxu0
        %v421 = vpop.f32.mrb[0].mxu0
        %v422 = vadd.f32 %v354, %v421
        %v423 = vpop.f32.mrb[0].mxu0
        %424 = vdwg.mxu0
        %v425 = vpack.c.bf16 %v268, %v267
        %s426 = scalar_lea.vmem [#allocation5], 64
        %v427 = vld [vmem:[%s426] sm:$0xf]
        %v428 = vld [vmem:[%s426 + $0x4] sm:$0xf]
        %v429 = vld [vmem:[%s426 + $0x8] sm:$0xf]
        %v430 = vld [vmem:[%s426 + $0xc] sm:$0xf]
        %v431 = vld [vmem:[%s426 + $0x10] sm:$0xf]
        %v432 = vld [vmem:[%s426 + $0x14] sm:$0xf]
        %v433 = vld [vmem:[%s426 + $0x18] sm:$0xf]
        %v434 = vld [vmem:[%s426 + $0x1c] sm:$0xf]
        %v443 = vunpack.c.l.b16 %v427
        %v444 = vunpack.c.l.b16 %v428
        %v445 = vunpack.c.l.b16 %v429
        %v446 = vunpack.c.l.b16 %v430
        %v447 = vunpack.c.l.b16 %v431
        %v448 = vunpack.c.l.b16 %v432
        %v449 = vunpack.c.l.b16 %v433
        %v450 = vunpack.c.l.b16 %v434
        %v451 = vpack.c.b16 %v444, %v443
        %v452 = vpack.c.b16 %v446, %v445
        %v453 = vpack.c.b16 %v448, %v447
        %v454 = vpack.c.b16 %v450, %v449
        %v460 = vsel %vm312, %v425, 0
        %462 = vmatprep.subr.bf16.mxu0 0
        %463 = vmatpush1.bf16.msra.mxu0 %v451
        %464 = vmatprep.subr.bf16.mxu0 0
        %465 = vmatpush1.bf16.msra.mxu0 %v452
        %466 = vmatprep.subr.bf16.mxu0 0
        %467 = vmatpush1.bf16.msra.mxu0 %v453
        %468 = vmatprep.subr.bf16.mxu0 0
        %469 = vmatpush1.bf16.msra.mxu0 %v454
        %470 = vmatprep.subr.bf16.mxu0 0
        %471 = vmatpush1.bf16.msra.mxu0 0
        %472 = vmatprep.subr.bf16.mxu0 0
        %473 = vmatpush1.bf16.msra.mxu0 0
        %474 = vmatprep.subr.bf16.mxu0 0
        %475 = vmatpush1.bf16.msra.mxu0 0
        %476 = vmatprep.subr.bf16.mxu0 0
        %477 = vmatpush1.bf16.msra.mxu0 0
        %478 = vmatprep.subr.bf16.mxu0 0
        %479 = vmatpush1.bf16.msra.mxu0 0
        %480 = vmatprep.subr.bf16.mxu0 0
        %481 = vmatpush1.bf16.msra.mxu0 0
        %482 = vmatprep.subr.bf16.mxu0 0
        %483 = vmatpush1.bf16.msra.mxu0 0
        %484 = vmatprep.subr.bf16.mxu0 0
        %485 = vmatpush1.bf16.msra.mxu0 0
        %486 = vmatprep.subr.bf16.mxu0 0
        %487 = vmatpush1.bf16.msra.mxu0 0
        %488 = vmatprep.subr.bf16.mxu0 0
        %489 = vmatpush1.bf16.msra.mxu0 0
        %490 = vmatprep.subr.bf16.mxu0 0
        %491 = vmatpush1.bf16.msra.mxu0 0
        %492 = vmatprep.subr.bf16.mxu0 0
        %493 = vmatpush1.bf16.msra.mxu0 0
        %494 = vmatprep.mubr.bf16.mxu0 0
        %495 = vmatmul.mubr.bf16.gmra.mrb[0].mxu0 %v460
        %v496 = vpop.f32.mrb[0].mxu0
        %v497 = vadd.f32 0.0, %v496
        %v498 = vpop.f32.mrb[0].mxu0
        %v499 = vpop.f32.mrb[0].mxu0
        %v500 = vadd.f32 0.0, %v499
        %v501 = vpop.f32.mrb[0].mxu0
        %502 = vdwg.mxu0
        %v503 = vadd.f32 %v419, %v497
        %v504 = vadd.f32 %v422, %v500
        %v505 = vld [vmem:[%s3] sm:$0x1]
        %v506 = vlaneseq
        %v507 = vshrl.u32 %v506, 7
        %v508 = vsub.s32 0, %v507
        %v509 = vrot.slane %v505, %v508
        %v510 = vadd.f32 %v503, %v509
        %v511 = vadd.f32 %v504, %v509
        %v512 = vmax.f32 %v510, 0.0
        %v513 = vmax.f32 %v511, 0.0
        %v514 = vrot.slane %v512, 7
        %v515 = vrot.slane %v513, 7
        %v516 = vsel %vm257, %v514, %v515
        %v517 = vsel %vm257, %v515, %v514
        %v518 = vsel %vm251, %v517, 0.0
        %v519 = vsel %vm252, %v516, 0.0
        %v520 = vrot.slane %v512, 1
        %v521 = vrot.slane %v513, 1
        %v522 = vsel %vm264, %v520, %v521
        %v523 = vsel %vm264, %v521, %v520
        %v524 = vsel %vm253, %v522, 0.0
        %v525 = vsel %vm254, %v523, 0.0
        %v526 = vpack.c.bf16 %v519, %v518
        %v527 = vld [vmem:[#allocation7] sm:$0xf]
        %v528 = vld [vmem:[#allocation7 + $0x4] sm:$0xf]
        %v529 = vld [vmem:[#allocation7 + $0x8] sm:$0xf]
        %v530 = vld [vmem:[#allocation7 + $0xc] sm:$0xf]
        %v531 = vld [vmem:[#allocation7 + $0x10] sm:$0xf]
        %v532 = vld [vmem:[#allocation7 + $0x14] sm:$0xf]
        %v533 = vld [vmem:[#allocation7 + $0x18] sm:$0xf]
        %v534 = vld [vmem:[#allocation7 + $0x1c] sm:$0xf]
        %v535 = vld [vmem:[#allocation7 + $0x20] sm:$0xf]
        %v536 = vld [vmem:[#allocation7 + $0x24] sm:$0xf]
        %v537 = vld [vmem:[#allocation7 + $0x28] sm:$0xf]
        %v538 = vld [vmem:[#allocation7 + $0x2c] sm:$0xf]
        %v539 = vld [vmem:[#allocation7 + $0x30] sm:$0xf]
        %v540 = vld [vmem:[#allocation7 + $0x34] sm:$0xf]
        %v541 = vld [vmem:[#allocation7 + $0x38] sm:$0xf]
        %v542 = vld [vmem:[#allocation7 + $0x3c] sm:$0xf]
        %v543 = vpack.c.bf16 %v513, %v512
        %s544 = scalar_lea.vmem [#allocation7], 64
        %v545 = vld [vmem:[%s544] sm:$0xf]
        %v546 = vld [vmem:[%s544 + $0x4] sm:$0xf]
        %v547 = vld [vmem:[%s544 + $0x8] sm:$0xf]
        %v548 = vld [vmem:[%s544 + $0xc] sm:$0xf]
        %v549 = vld [vmem:[%s544 + $0x10] sm:$0xf]
        %v550 = vld [vmem:[%s544 + $0x14] sm:$0xf]
        %v551 = vld [vmem:[%s544 + $0x18] sm:$0xf]
        %v552 = vld [vmem:[%s544 + $0x1c] sm:$0xf]
        %v553 = vld [vmem:[%s544 + $0x20] sm:$0xf]
        %v554 = vld [vmem:[%s544 + $0x24] sm:$0xf]
        %v555 = vld [vmem:[%s544 + $0x28] sm:$0xf]
        %v556 = vld [vmem:[%s544 + $0x2c] sm:$0xf]
        %v557 = vld [vmem:[%s544 + $0x30] sm:$0xf]
        %v558 = vld [vmem:[%s544 + $0x34] sm:$0xf]
        %v559 = vld [vmem:[%s544 + $0x38] sm:$0xf]
        %v560 = vld [vmem:[%s544 + $0x3c] sm:$0xf]
        %v577 = vunpack.c.l.b16 %v545
        %v578 = vunpack.c.l.b16 %v546
        %v579 = vunpack.c.l.b16 %v547
        %v580 = vunpack.c.l.b16 %v548
        %v581 = vunpack.c.l.b16 %v549
        %v582 = vunpack.c.l.b16 %v550
        %v583 = vunpack.c.l.b16 %v551
        %v584 = vunpack.c.l.b16 %v552
        %v585 = vunpack.c.l.b16 %v553
        %v586 = vunpack.c.l.b16 %v554
        %v587 = vunpack.c.l.b16 %v555
        %v588 = vunpack.c.l.b16 %v556
        %v589 = vunpack.c.l.b16 %v557
        %v590 = vunpack.c.l.b16 %v558
        %v591 = vunpack.c.l.b16 %v559
        %v592 = vunpack.c.l.b16 %v560
        %v593 = vpack.c.b16 %v578, %v577
        %v594 = vpack.c.b16 %v580, %v579
        %v595 = vpack.c.b16 %v582, %v581
        %v596 = vpack.c.b16 %v584, %v583
        %v597 = vpack.c.b16 %v586, %v585
        %v598 = vpack.c.b16 %v588, %v587
        %v599 = vpack.c.b16 %v590, %v589
        %v600 = vpack.c.b16 %v592, %v591
        %609 = vmatprep.subr.bf16.mxu0 0
        %610 = vmatpush1.bf16.msra.mxu0 %v593
        %611 = vmatprep.subr.bf16.mxu0 0
        %612 = vmatpush1.bf16.msra.mxu0 %v594
        %613 = vmatprep.subr.bf16.mxu0 0
        %614 = vmatpush1.bf16.msra.mxu0 %v595
        %615 = vmatprep.subr.bf16.mxu0 0
        %616 = vmatpush1.bf16.msra.mxu0 %v596
        %617 = vmatprep.subr.bf16.mxu0 0
        %618 = vmatpush1.bf16.msra.mxu0 %v597
        %619 = vmatprep.subr.bf16.mxu0 0
        %620 = vmatpush1.bf16.msra.mxu0 %v598
        %621 = vmatprep.subr.bf16.mxu0 0
        %622 = vmatpush1.bf16.msra.mxu0 %v599
        %623 = vmatprep.subr.bf16.mxu0 0
        %624 = vmatpush1.bf16.msra.mxu0 %v600
        %625 = vmatprep.subr.bf16.mxu0 0
        %626 = vmatpush1.bf16.msra.mxu0 0
        %627 = vmatprep.subr.bf16.mxu0 0
        %628 = vmatpush1.bf16.msra.mxu0 0
        %629 = vmatprep.subr.bf16.mxu0 0
        %630 = vmatpush1.bf16.msra.mxu0 0
        %631 = vmatprep.subr.bf16.mxu0 0
        %632 = vmatpush1.bf16.msra.mxu0 0
        %633 = vmatprep.subr.bf16.mxu0 0
        %634 = vmatpush1.bf16.msra.mxu0 0
        %635 = vmatprep.subr.bf16.mxu0 0
        %636 = vmatpush1.bf16.msra.mxu0 0
        %637 = vmatprep.subr.bf16.mxu0 0
        %638 = vmatpush1.bf16.msra.mxu0 0
        %639 = vmatprep.subr.bf16.mxu0 0
        %640 = vmatpush1.bf16.msra.mxu0 0
        %641 = vmatprep.mubr.bf16.mxu0 0
        %642 = vmatmul.mubr.bf16.gmra.mrb[0].mxu0 %v543
        %v643 = vpop.f32.mrb[0].mxu0
        %v644 = vadd.f32 0.0, %v643
        %v645 = vpop.f32.mrb[0].mxu0
        %v646 = vpop.f32.mrb[0].mxu0
        %v647 = vadd.f32 0.0, %v646
        %v648 = vpop.f32.mrb[0].mxu0
        %649 = vdwg.mxu0
        %v666 = vunpack.c.l.b16 %v527
        %v667 = vunpack.c.l.b16 %v528
        %v668 = vunpack.c.l.b16 %v529
        %v669 = vunpack.c.l.b16 %v530
        %v670 = vunpack.c.l.b16 %v531
        %v671 = vunpack.c.l.b16 %v532
        %v672 = vunpack.c.l.b16 %v533
        %v673 = vunpack.c.l.b16 %v534
        %v674 = vunpack.c.l.b16 %v535
        %v675 = vunpack.c.l.b16 %v536
        %v676 = vunpack.c.l.b16 %v537
        %v677 = vunpack.c.l.b16 %v538
        %v678 = vunpack.c.l.b16 %v539
        %v679 = vunpack.c.l.b16 %v540
        %v680 = vunpack.c.l.b16 %v541
        %v681 = vunpack.c.l.b16 %v542
        %v682 = vpack.c.b16 %v667, %v666
        %v683 = vpack.c.b16 %v669, %v668
        %v684 = vpack.c.b16 %v671, %v670
        %v685 = vpack.c.b16 %v673, %v672
        %v686 = vpack.c.b16 %v675, %v674
        %v687 = vpack.c.b16 %v677, %v676
        %v688 = vpack.c.b16 %v679, %v678
        %v689 = vpack.c.b16 %v681, %v680
        %698 = vmatprep.subr.bf16.mxu0 0
        %699 = vmatpush1.bf16.msra.mxu0 %v682
        %700 = vmatprep.subr.bf16.mxu0 0
        %701 = vmatpush1.bf16.msra.mxu0 %v683
        %702 = vmatprep.subr.bf16.mxu0 0
        %703 = vmatpush1.bf16.msra.mxu0 %v684
        %704 = vmatprep.subr.bf16.mxu0 0
        %705 = vmatpush1.bf16.msra.mxu0 %v685
        %706 = vmatprep.subr.bf16.mxu0 0
        %707 = vmatpush1.bf16.msra.mxu0 %v686
        %708 = vmatprep.subr.bf16.mxu0 0
        %709 = vmatpush1.bf16.msra.mxu0 %v687
        %710 = vmatprep.subr.bf16.mxu0 0
        %711 = vmatpush1.bf16.msra.mxu0 %v688
        %712 = vmatprep.subr.bf16.mxu0 0
        %713 = vmatpush1.bf16.msra.mxu0 %v689
        %714 = vmatprep.subr.bf16.mxu0 0
        %715 = vmatpush1.bf16.msra.mxu0 0
        %716 = vmatprep.subr.bf16.mxu0 0
        %717 = vmatpush1.bf16.msra.mxu0 0
        %718 = vmatprep.subr.bf16.mxu0 0
        %719 = vmatpush1.bf16.msra.mxu0 0
        %720 = vmatprep.subr.bf16.mxu0 0
        %721 = vmatpush1.bf16.msra.mxu0 0
        %722 = vmatprep.subr.bf16.mxu0 0
        %723 = vmatpush1.bf16.msra.mxu0 0
        %724 = vmatprep.subr.bf16.mxu0 0
        %725 = vmatpush1.bf16.msra.mxu0 0
        %726 = vmatprep.subr.bf16.mxu0 0
        %727 = vmatpush1.bf16.msra.mxu0 0
        %728 = vmatprep.subr.bf16.mxu0 0
        %729 = vmatpush1.bf16.msra.mxu0 0
        %730 = vmatprep.mubr.bf16.mxu0 0
        %731 = vmatmul.mubr.bf16.gmra.mrb[0].mxu0 %v526
        %v732 = vpop.f32.mrb[0].mxu0
        %v733 = vadd.f32 %v644, %v732
        %v734 = vpop.f32.mrb[0].mxu0
        %v735 = vpop.f32.mrb[0].mxu0
        %v736 = vadd.f32 %v647, %v735
        %v737 = vpop.f32.mrb[0].mxu0
        %738 = vdwg.mxu0
        %v739 = vpack.c.bf16 %v525, %v524
        %s740 = scalar_lea.vmem [#allocation7], 128
        %v741 = vld [vmem:[%s740] sm:$0xf]
        %v742 = vld [vmem:[%s740 + $0x4] sm:$0xf]
        %v743 = vld [vmem:[%s740 + $0x8] sm:$0xf]
        %v744 = vld [vmem:[%s740 + $0xc] sm:$0xf]
        %v745 = vld [vmem:[%s740 + $0x10] sm:$0xf]
        %v746 = vld [vmem:[%s740 + $0x14] sm:$0xf]
        %v747 = vld [vmem:[%s740 + $0x18] sm:$0xf]
        %v748 = vld [vmem:[%s740 + $0x1c] sm:$0xf]
        %v749 = vld [vmem:[%s740 + $0x20] sm:$0xf]
        %v750 = vld [vmem:[%s740 + $0x24] sm:$0xf]
        %v751 = vld [vmem:[%s740 + $0x28] sm:$0xf]
        %v752 = vld [vmem:[%s740 + $0x2c] sm:$0xf]
        %v753 = vld [vmem:[%s740 + $0x30] sm:$0xf]
        %v754 = vld [vmem:[%s740 + $0x34] sm:$0xf]
        %v755 = vld [vmem:[%s740 + $0x38] sm:$0xf]
        %v756 = vld [vmem:[%s740 + $0x3c] sm:$0xf]
        %v773 = vunpack.c.l.b16 %v741
        %v774 = vunpack.c.l.b16 %v742
        %v775 = vunpack.c.l.b16 %v743
        %v776 = vunpack.c.l.b16 %v744
        %v777 = vunpack.c.l.b16 %v745
        %v778 = vunpack.c.l.b16 %v746
        %v779 = vunpack.c.l.b16 %v747
        %v780 = vunpack.c.l.b16 %v748
        %v781 = vunpack.c.l.b16 %v749
        %v782 = vunpack.c.l.b16 %v750
        %v783 = vunpack.c.l.b16 %v751
        %v784 = vunpack.c.l.b16 %v752
        %v785 = vunpack.c.l.b16 %v753
        %v786 = vunpack.c.l.b16 %v754
        %v787 = vunpack.c.l.b16 %v755
        %v788 = vunpack.c.l.b16 %v756
        %v789 = vpack.c.b16 %v774, %v773
        %v790 = vpack.c.b16 %v776, %v775
        %v791 = vpack.c.b16 %v778, %v777
        %v792 = vpack.c.b16 %v780, %v779
        %v793 = vpack.c.b16 %v782, %v781
        %v794 = vpack.c.b16 %v784, %v783
        %v795 = vpack.c.b16 %v786, %v785
        %v796 = vpack.c.b16 %v788, %v787
        %805 = vmatprep.subr.bf16.mxu0 0
        %806 = vmatpush1.bf16.msra.mxu0 %v789
        %807 = vmatprep.subr.bf16.mxu0 0
        %808 = vmatpush1.bf16.msra.mxu0 %v790
        %809 = vmatprep.subr.bf16.mxu0 0
        %810 = vmatpush1.bf16.msra.mxu0 %v791
        %811 = vmatprep.subr.bf16.mxu0 0
        %812 = vmatpush1.bf16.msra.mxu0 %v792
        %813 = vmatprep.subr.bf16.mxu0 0
        %814 = vmatpush1.bf16.msra.mxu0 %v793
        %815 = vmatprep.subr.bf16.mxu0 0
        %816 = vmatpush1.bf16.msra.mxu0 %v794
        %817 = vmatprep.subr.bf16.mxu0 0
        %818 = vmatpush1.bf16.msra.mxu0 %v795
        %819 = vmatprep.subr.bf16.mxu0 0
        %820 = vmatpush1.bf16.msra.mxu0 %v796
        %821 = vmatprep.subr.bf16.mxu0 0
        %822 = vmatpush1.bf16.msra.mxu0 0
        %823 = vmatprep.subr.bf16.mxu0 0
        %824 = vmatpush1.bf16.msra.mxu0 0
        %825 = vmatprep.subr.bf16.mxu0 0
        %826 = vmatpush1.bf16.msra.mxu0 0
        %827 = vmatprep.subr.bf16.mxu0 0
        %828 = vmatpush1.bf16.msra.mxu0 0
        %829 = vmatprep.subr.bf16.mxu0 0
        %830 = vmatpush1.bf16.msra.mxu0 0
        %831 = vmatprep.subr.bf16.mxu0 0
        %832 = vmatpush1.bf16.msra.mxu0 0
        %833 = vmatprep.subr.bf16.mxu0 0
        %834 = vmatpush1.bf16.msra.mxu0 0
        %835 = vmatprep.subr.bf16.mxu0 0
        %836 = vmatpush1.bf16.msra.mxu0 0
        %837 = vmatprep.mubr.bf16.mxu0 0
        %838 = vmatmul.mubr.bf16.gmra.mrb[0].mxu0 %v739
        %v839 = vpop.f32.mrb[0].mxu0
        %v840 = vadd.f32 0.0, %v839
        %v841 = vpop.f32.mrb[0].mxu0
        %v842 = vpop.f32.mrb[0].mxu0
        %v843 = vadd.f32 0.0, %v842
        %v844 = vpop.f32.mrb[0].mxu0
        %845 = vdwg.mxu0
        %v846 = vadd.f32 %v733, %v840
        %v847 = vadd.f32 %v736, %v843
        %v848 = vld [vmem:[%s3 + $0x1] sm:$0x1]
        %v849 = vlaneseq
        %v850 = vshrl.u32 %v849, 7
        %v851 = vsub.s32 0, %v850
        %v852 = vrot.slane %v848, %v851
        %v853 = vadd.f32 %v846, %v852
        %v854 = vadd.f32 %v847, %v852
        %v855 = vmax.f32 %v853, 0.0
        %v856 = vmax.f32 %v854, 0.0
        %857 = vst [vmem:[%s244] sm:$0xff] %v855
        %858 = vst [vmem:[%s244 + $0x8] sm:$0xff] %v856
        %s859 = sand.u32 %s119, 1
        %s860 = scalar_lea.sflag [#allocation4], %s859
        %s861 = sand.u32 %s119, 1
        %s862 = smul.addr %s861, 16
        %s863 = scalar_lea.vmem [#allocation8], %s862
        // Predicated region
        $region49: #{tpu_custom_call.1} parent=35 // pred_check
          %p864 = pneg %p129
        $region50: #{tpu_custom_call.1} parent=35 // pred_check_branch
          %866 = sbr.rel (%p864) target = $region52
        $region51: #{tpu_custom_call.1} parent=35 // pred_region
          %s868 = ssub.s32 256, 256
          %869 = vsyncadd %s860, %s868
          %s870 = smul.addr %s22, 2
          %s871 = smul.addr %s870, 128
          %s872 = scalar_lea.hbm %s4, %s871
          %s873 = sshll.u32 %s863, 4
          %s874 = int_to_ptr.vmem [resolvable:$true] %s873
          %879 = dma.vmem_to_hbm [thread:$0]  %s874, 256, %s872, %s860, 128, 128, 8
        $region52: #{tpu_custom_call.1} parent=35 // pred_fallthru
          _
      $region36: #{tpu_custom_call.1} parent=5 // pred_fallthru
        _
      %p880 = scmp.le.s32.totalorder 2, %s17
      // Predicated region
      $region53: #{tpu_custom_call.1} parent=5 // pred_check
        %p881 = pneg %p880
      $region54: #{tpu_custom_call.1} parent=5 // pred_check_branch
        %883 = sbr.rel (%p881) target = $region56
      $region55: #{tpu_custom_call.1} parent=5 // pred_region
        %s884 = ssub.s32 %s17, 2
        // Predicated region
        $region57: #{tpu_custom_call.1} parent=55 // pred_check
          %p885 = pneg %p135
        $region58: #{tpu_custom_call.1} parent=55 // pred_check_branch
          %887 = sbr.rel (%p885) target = $region60
        $region59: #{tpu_custom_call.1} parent=55 // pred_region
          %s888 = sand.u32 %s120, 1
          %s889 = scalar_lea.sflag [#allocation4], %s888
          %s890 = sand.u32 %s120, 1
          %s891 = smul.addr %s890, 16
          %s892 = scalar_lea.vmem [#allocation8], %s891
          %893 = dma.done %s889, 256
        $region60: #{tpu_custom_call.1} parent=55 // pred_fallthru
          _
      $region56: #{tpu_custom_call.1} parent=5 // pred_fallthru
        _
    $region6: #{tpu_custom_call.1} parent=1 // loop_footer
      %s21 = sadd.s32 1, %s17
    $region7: #{tpu_custom_call.1} parent=1 // loop_footer_branch
      %16 = sbr.rel target = $region3
    $region8: #{tpu_custom_call.1} parent=1 // loop_exit
      _
    %894 = vsyncpa [#allocation3], 1
    %s895 = scalar_lea.sflag [#allocation3], 1
    %896 = vsyncpa %s895, 1
    %897 = vsyncpa [#allocation6], 1
    %898 = vsyncpa [#allocation4], 1
    %s899 = scalar_lea.sflag [#allocation4], 1
    %900 = vsyncpa %s899, 1

</llo_original>
